<compile_context>
chip_gen: v7x
topology: tpu7x:2x2x1
jax: 0.10.0
libtpu: 0.0.40
codegen_flags: <defaults>
</compile_context>

<pallas_src>
import functools

import jax
import jax.numpy as jnp
from jax import lax
from jax.experimental import pallas as pl
from jax.experimental.pallas import tpu as pltpu

NORM_EPSILON = 1e-08
BN_EPS = 1e-05


# --------------------------- hardware-aware knobs ---------------------------

def _vmem_capacity_bytes():
    """Physical VMEM per core; conservative 64 MiB (v7x) if query unavailable."""
    try:
        cap = int(getattr(pltpu.get_tpu_info(), "vmem_capacity_bytes", 0))
        if cap > 0:
            return cap
    except Exception:
        pass
    return 64 << 20


def _budgets():
    cap = _vmem_capacity_bytes()
    if cap <= (64 << 20):            # v7x: 64 MiB physical VMEM
        vmem_limit = 44 << 20        # leave headroom under physical
        max_tile_bytes = 6 << 20     # amortize ~0.35us/step vs 3.2 TB/s HBM
    else:                            # v5e / v6e: 128 MiB physical VMEM
        vmem_limit = 64 << 20
        max_tile_bytes = 2 << 20     # already ~85% of roofline on these parts
    return vmem_limit, max_tile_bytes


# ------------------------------ tile selection -------------------------------

def _channel_tile_candidates(C, itemsize):
    # Sub-32-bit dtypes pack along sublanes: minimum sublane tile is 8 (f32),
    # 16 (bf16/f16), 32 (int8/fp8). A full-C block is always legal.
    min_sub = {4: 8, 2: 16, 1: 32}.get(itemsize, 8)
    cands = [t for t in (128, 64, 32, 16, 8)
             if t % min_sub == 0 and C % t == 0]
    cands.append(C)
    return sorted(set(cands), reverse=True)


def _pick_spatial_tile(HW, tc, itemsize, max_tile_bytes):
    # Lane-dense last dim: largest multiple of 128 dividing HW such that one
    # (tc, ts) tile stays under the per-tile budget. Non-128-multiple HW falls
    # back to the full axis (legal, masked stores); the caller bounds tc.
    if HW % 128 == 0:
        max_elems = max(128, (max_tile_bytes // (itemsize * tc)) // 128 * 128)
        ts = min(HW, max_elems)
        while ts > 128 and HW % ts != 0:
            ts -= 128
        if HW % ts == 0:
            return ts
    return HW


# --------------------------------- kernels -----------------------------------

def _bn_fused_kernel(x_ref, w_ref, b_ref, o_ref, *, inv_count, eps):
    # Fused stats + apply for one channel tile.
    #   x_ref/o_ref: (N, tc, HW); w_ref/b_ref: (1, tc, 1)
    x = x_ref[...].astype(jnp.float32)                               # (N, tc, HW)
    mean = jnp.sum(jnp.sum(x, axis=2, keepdims=True),
                   axis=0, keepdims=True) * inv_count                # (1, tc, 1)
    d = x - mean
    var = jnp.sum(jnp.sum(d * d, axis=2, keepdims=True),
                  axis=0, keepdims=True) * inv_count                 # (1, tc, 1)
    scale = lax.rsqrt(var + eps) * w_ref[...]
    o_ref[...] = (d * scale + b_ref[...]).astype(o_ref.dtype)


def _bn_stats_kernel(x_ref, sum_ref, ssq_ref):
    # x_ref: (tc, ts); sum_ref/ssq_ref: (tc, 1) accumulators resident across
    # the trailing (N-chunk, spatial) reduction axes.
    n = pl.program_id(2)
    s = pl.program_id(3)

    @pl.when((n == 0) & (s == 0))
    def _():
        sum_ref[...] = jnp.zeros_like(sum_ref)
        ssq_ref[...] = jnp.zeros_like(ssq_ref)

    x = x_ref[...].astype(jnp.float32)                       # (tc, ts)
    sum_ref[...] += jnp.sum(x, axis=1, keepdims=True)        # lane reduce -> XLU
    ssq_ref[...] += jnp.sum(x * x, axis=1, keepdims=True)


def _bn_apply_kernel(x_ref, scale_ref, shift_ref, o_ref):
    # x_ref/o_ref: (tc, ts); scale_ref/shift_ref: (tc, 1) broadcast over lanes.
    x = x_ref[...].astype(jnp.float32)
    o_ref[...] = (x * scale_ref[...] + shift_ref[...]).astype(o_ref.dtype)


# --------------------------------- wrapper -----------------------------------

def batch_norm2d_pallas(x_nchw, w_applied, b_applied, eps=BN_EPS,
                        force_two_pass=False):
    """x_nchw: (N, C, H, W); w_applied/b_applied: (C,). Returns (N, C, H, W)."""
    N, C, H, W = x_nchw.shape
    HW = H * W
    L = N * HW
    itemsize = jnp.dtype(x_nchw.dtype).itemsize
    x_nc_hw = x_nchw.reshape(N, C, HW)               # free reshape, no HBM copy

    vmem_limit, max_tile_bytes = _budgets()
    cands = _channel_tile_candidates(C, itemsize)

    # ---- fused single-pass path (2x HBM traffic instead of 3x) --------------
    if not force_two_pass:
        fused_budget = max(vmem_limit - (8 << 20), 8 << 20)
        fused_tc = None
        for cand in cands:           # largest fitting tc => fewest grid steps
            # 2x in + 2x out (double-buffered) + f32 temps, counted in f32.
            if 8 * N * cand * HW * 4 <= fused_budget:
                fused_tc = cand
                break
        if fused_tc is not None:
            tc = fused_tc
            n_c = C // tc
            w3 = w_applied.astype(jnp.float32).reshape(1, C, 1)
            b3 = b_applied.astype(jnp.float32).reshape(1, C, 1)
            kernel = functools.partial(_bn_fused_kernel,
                                       inv_count=1.0 / L, eps=float(eps))
            y = pl.pallas_call(
                kernel,
                out_shape=jax.ShapeDtypeStruct((N, C, HW), x_nchw.dtype),
                grid_spec=pltpu.PrefetchScalarGridSpec(
                    num_scalar_prefetch=0,
                    grid=(n_c,),
                    in_specs=[pl.BlockSpec((N, tc, HW), lambda c: (0, c, 0)),
                              pl.BlockSpec((1, tc, 1), lambda c: (0, c, 0)),
                              pl.BlockSpec((1, tc, 1), lambda c: (0, c, 0))],
                    out_specs=pl.BlockSpec((N, tc, HW), lambda c: (0, c, 0)),
                ),
                compiler_params=pltpu.CompilerParams(
                    dimension_semantics=("parallel",),
                    vmem_limit_bytes=vmem_limit),
            )(x_nc_hw, w3, b3)
            return y.reshape(N, C, H, W)

    # ---- two-pass fallback (slab does not fit VMEM) --------------------------
    tc = next((t for t in cands if t <= 64), cands[-1])
    ts = _pick_spatial_tile(HW, tc, itemsize, max_tile_bytes)
    if ts == HW and tc * HW * itemsize > max_tile_bytes:
        # Bounded fallback for non-128-multiple spatial sizes: shrink tc.
        shrunk = False
        for cand in sorted(cands):
            if cand * HW * itemsize <= max_tile_bytes:
                tc = cand
                shrunk = True
                break
        if not shrunk:
            tc = min(cands)
            # TODO(synk): split non-128-multiple HW into a masked tail block
            # when even the minimum channel tile exceeds the tile budget.
    n_c = C // tc
    n_s = HW // ts

    # Megacore-friendly partial-sum split over the batch; the P partials are
    # reduced in the (C,)-sized JAX epilogue below.
    P = 2 if (N % 2 == 0 and N >= 2) else 1
    Np = N // P

    sums, ssqs = pl.pallas_call(
        _bn_stats_kernel,
        out_shape=(jax.ShapeDtypeStruct((P, C, 1), jnp.float32),
                   jax.ShapeDtypeStruct((P, C, 1), jnp.float32)),
        grid_spec=pltpu.PrefetchScalarGridSpec(
            num_scalar_prefetch=0,
            grid=(P, n_c, Np, n_s),
            in_specs=[pl.BlockSpec((None, tc, ts),
                                   lambda p, c, n, s: (p * Np + n, c, s))],
            out_specs=(pl.BlockSpec((None, tc, 1), lambda p, c, n, s: (p, c, 0)),
                       pl.BlockSpec((None, tc, 1), lambda p, c, n, s: (p, c, 0))),
        ),
        compiler_params=pltpu.CompilerParams(
            dimension_semantics=("parallel", "parallel", "arbitrary", "arbitrary"),
            vmem_limit_bytes=vmem_limit),
    )(x_nc_hw)

    # Tiny (C,)-sized epilogue math stays in plain JAX.
    # TODO(synk): E[x^2]-mean^2 in f32 loses precision when |mean| >> std; the
    # fused path above uses the shifted two-step form instead.
    total = jnp.sum(sums[:, :, 0], axis=0)
    total_sq = jnp.sum(ssqs[:, :, 0], axis=0)
    mean = total / L
    var = jnp.maximum(total_sq / L - mean * mean, 0.0)   # biased batch variance
    inv_std = lax.rsqrt(var + eps)
    w32 = w_applied.astype(jnp.float32)
    b32 = b_applied.astype(jnp.float32)
    scale = (inv_std * w32).reshape(C, 1)
    shift = (b32 - mean * inv_std * w32).reshape(C, 1)

    y = pl.pallas_call(
        _bn_apply_kernel,
        out_shape=jax.ShapeDtypeStruct((N, C, HW), x_nchw.dtype),
        grid_spec=pltpu.PrefetchScalarGridSpec(
            num_scalar_prefetch=0,
            grid=(n_c, N, n_s),
            in_specs=[pl.BlockSpec((None, tc, ts), lambda c, n, s: (n, c, s)),
                      pl.BlockSpec((tc, 1), lambda c, n, s: (c, 0)),
                      pl.BlockSpec((tc, 1), lambda c, n, s: (c, 0))],
            out_specs=pl.BlockSpec((None, tc, ts), lambda c, n, s: (n, c, s)),
        ),
        compiler_params=pltpu.CompilerParams(
            dimension_semantics=("parallel", "parallel", "parallel"),
            vmem_limit_bytes=vmem_limit),
    )(x_nc_hw, scale, shift)

    return y.reshape(N, C, H, W)


# ------------------------ SharedMagnitude parameter glue --------------------

def _norm2(t):
    # torch.sum(t ** 2, axis=0) ** 0.5
    return jnp.sqrt(jnp.sum(t * t, axis=0))


def _get_applied(param, param_magnitude, j):
    # is_variance only toggles detach() in torch => numerically identical here.
    norm = _norm2(param)
    return (param[j] / (norm + NORM_EPSILON)) * param_magnitude


def make_batch_norm_params(m, num_features):
    # create_batch_norm_params: weight = ones(m, C), bias = zeros(m, C)
    weight = jnp.ones((m, num_features), jnp.float32)
    bias = jnp.zeros((m, num_features), jnp.float32)
    return weight, bias, _norm2(weight), _norm2(bias)


def batch_norm2d_forward(x, params, j, is_variance=False, eps=BN_EPS,
                         force_two_pass=False):
    weight, bias, weight_mag, bias_mag = params
    w = _get_applied(weight, weight_mag, j)
    b = _get_applied(bias, bias_mag, j)
    return batch_norm2d_pallas(x, w, b, eps=eps, force_two_pass=force_two_pass)


# ----------------------------------- test ------------------------------------

if __name__ == "__main__":
    m = 3
    key = jax.random.PRNGKey(0)

    def run_case(case_key, N, C, H, W, force_two_pass):
        kx, kw, kb = jax.random.split(case_key, 3)
        x = jax.random.normal(kx, (N, C, H, W), dtype=jnp.float32)
        # Module-style params, slightly perturbed so the affine path is
        # exercised (magnitudes fixed at creation, as in create_normed_params).
        weight = jnp.ones((m, C), jnp.float32) \
            + 0.1 * jax.random.normal(kw, (m, C), dtype=jnp.float32)
        bias = 0.1 * jax.random.normal(kb, (m, C), dtype=jnp.float32)
        params = (weight, bias, _norm2(weight), _norm2(bias))
        j = 1

        y = batch_norm2d_forward(x, params, j, is_variance=False,
                                 force_two_pass=force_two_pass)
        y = jax.block_until_ready(y)

        # Reference (pure JAX, training-mode batch norm with applied params).
        w_ref = _get_applied(weight, params[2], j)
        b_ref = _get_applied(bias, params[3], j)
        mean = jnp.mean(x, axis=(0, 2, 3), keepdims=True)
        var = jnp.mean((x - mean) ** 2, axis=(0, 2, 3), keepdims=True)
        y_ref = (x - mean) / jnp.sqrt(var + BN_EPS) * w_ref.reshape(1, C, 1, 1) \
                + b_ref.reshape(1, C, 1, 1)

        assert y.shape == (N, C, H, W)
        assert jnp.allclose(y, y_ref, atol=1e-5, rtol=1e-5), \
            (N, C, H, W, force_two_pass)

    k1, k2, k3 = jax.random.split(key, 3)
    # Fused single-pass path (module-scale shapes).
    run_case(k1, 2, 4, 16, 16, force_two_pass=False)
    # Two-pass path: channel tiling + megacore partial-sum split + apply pass.
    run_case(k2, 2, 16, 16, 16, force_two_pass=True)
    # Non-128-multiple spatial fallback (masked lane tail), two-pass path.
    run_case(k3, 2, 8, 10, 10, force_two_pass=True)

    print("KERNEL_OK")
</pallas_src>

<mosaic_0001>
module attributes {stable_mosaic.version = 11 : i64} {
  func.func @_bn_fused_kernel(%arg0: i32, %arg1: memref<2x4x256xf32, #tpu.memory_space<vmem>>, %arg2: memref<1x4x1xf32, #tpu.memory_space<vmem>>, %arg3: memref<1x4x1xf32, #tpu.memory_space<vmem>>, %arg4: memref<2x4x256xf32, #tpu.memory_space<vmem>>) attributes {dimension_semantics = [#tpu.dimension_semantics<parallel>], iteration_bounds = array<i64: 1>, scalar_prefetch = 0 : i64, scratch_operands = 0 : i64, tpu.core_type = #tpu.core_type<tc>, window_params = [{transform_indices = @transform_0, window_bounds = array<i64: 2, 4, 256>}, {transform_indices = @transform_1, window_bounds = array<i64: 1, 4, 1>}, {transform_indices = @transform_2, window_bounds = array<i64: 1, 4, 1>}, {transform_indices = @transform_3, window_bounds = array<i64: 2, 4, 256>}]} {
    %c0 = arith.constant 0 : index
    %c0_0 = arith.constant 0 : index
    %c0_1 = arith.constant 0 : index
    %0 = vector.load %arg1[%c0, %c0_0, %c0_1] : memref<2x4x256xf32, #tpu.memory_space<vmem>>, vector<2x4x256xf32>
    %cst = arith.constant dense<0.000000e+00> : vector<2x4xf32>
    %1 = vector.multi_reduction <add>, %0, %cst [2] : vector<2x4x256xf32> to vector<2x4xf32>
    %2 = vector.shape_cast %1 : vector<2x4xf32> to vector<2x4x1xf32>
    %cst_2 = arith.constant dense<0.000000e+00> : vector<4x1xf32>
    %3 = vector.multi_reduction <add>, %2, %cst_2 [0] : vector<2x4x1xf32> to vector<4x1xf32>
    %4 = vector.shape_cast %3 : vector<4x1xf32> to vector<1x4x1xf32>
    %cst_3 = arith.constant 0.001953125 : f32
    %5 = vector.broadcast %cst_3 : f32 to vector<1x4x1xf32>
    %6 = arith.mulf %4, %5 : vector<1x4x1xf32>
    %7 = vector.broadcast %6 : vector<1x4x1xf32> to vector<2x4x256xf32>
    %8 = arith.subf %0, %7 : vector<2x4x256xf32>
    %9 = arith.mulf %8, %8 : vector<2x4x256xf32>
    %cst_4 = arith.constant dense<0.000000e+00> : vector<2x4xf32>
    %10 = vector.multi_reduction <add>, %9, %cst_4 [2] : vector<2x4x256xf32> to vector<2x4xf32>
    %11 = vector.shape_cast %10 : vector<2x4xf32> to vector<2x4x1xf32>
    %cst_5 = arith.constant dense<0.000000e+00> : vector<4x1xf32>
    %12 = vector.multi_reduction <add>, %11, %cst_5 [0] : vector<2x4x1xf32> to vector<4x1xf32>
    %13 = vector.shape_cast %12 : vector<4x1xf32> to vector<1x4x1xf32>
    %cst_6 = arith.constant 0.001953125 : f32
    %14 = vector.broadcast %cst_6 : f32 to vector<1x4x1xf32>
    %15 = arith.mulf %13, %14 : vector<1x4x1xf32>
    %cst_7 = arith.constant 9.99999974E-6 : f32
    %16 = vector.broadcast %cst_7 : f32 to vector<1x4x1xf32>
    %17 = arith.addf %15, %16 : vector<1x4x1xf32>
    %18 = math.rsqrt %17 : vector<1x4x1xf32>
    %c0_8 = arith.constant 0 : index
    %c0_9 = arith.constant 0 : index
    %c0_10 = arith.constant 0 : index
    %19 = vector.load %arg2[%c0_8, %c0_9, %c0_10] : memref<1x4x1xf32, #tpu.memory_space<vmem>>, vector<1x4x1xf32>
    %20 = arith.mulf %18, %19 : vector<1x4x1xf32>
    %21 = vector.broadcast %20 : vector<1x4x1xf32> to vector<2x4x256xf32>
    %22 = arith.mulf %8, %21 : vector<2x4x256xf32>
    %c0_11 = arith.constant 0 : index
    %c0_12 = arith.constant 0 : index
    %c0_13 = arith.constant 0 : index
    %23 = vector.load %arg3[%c0_11, %c0_12, %c0_13] : memref<1x4x1xf32, #tpu.memory_space<vmem>>, vector<1x4x1xf32>
    %24 = vector.broadcast %23 : vector<1x4x1xf32> to vector<2x4x256xf32>
    %25 = arith.addf %22, %24 : vector<2x4x256xf32>
    %c0_14 = arith.constant 0 : index
    %c0_15 = arith.constant 0 : index
    %c0_16 = arith.constant 0 : index
    %26 = vector.load %arg4[%c0_14, %c0_15, %c0_16] : memref<2x4x256xf32, #tpu.memory_space<vmem>>, vector<2x4x256xf32>
    tpu.vector_store %arg4[%c0_14, %c0_15, %c0_16], %25 {strides = array<i32>} : memref<2x4x256xf32, #tpu.memory_space<vmem>>, vector<2x4x256xf32>,
    return
  }
  func.func @transform_0(%arg0: i32) -> (i32, i32, i32) {
    %c0_i32 = arith.constant 0 : i32
    %c0_i32_0 = arith.constant 0 : i32
    %c0_i32_1 = arith.constant 0 : i32
    return %c0_i32, %arg0, %c0_i32_0 : i32, i32, i32
  }
  func.func @transform_1(%arg0: i32) -> (i32, i32, i32) {
    %c0_i32 = arith.constant 0 : i32
    %c0_i32_0 = arith.constant 0 : i32
    %c0_i32_1 = arith.constant 0 : i32
    return %c0_i32, %arg0, %c0_i32_0 : i32, i32, i32
  }
  func.func @transform_2(%arg0: i32) -> (i32, i32, i32) {
    %c0_i32 = arith.constant 0 : i32
    %c0_i32_0 = arith.constant 0 : i32
    %c0_i32_1 = arith.constant 0 : i32
    return %c0_i32, %arg0, %c0_i32_0 : i32, i32, i32
  }
  func.func @transform_3(%arg0: i32) -> (i32, i32, i32) {
    %c0_i32 = arith.constant 0 : i32
    %c0_i32_0 = arith.constant 0 : i32
    %c0_i32_1 = arith.constant 0 : i32
    return %c0_i32, %arg0, %c0_i32_0 : i32, i32, i32
  }
}

</mosaic_0001>

<llo_original>
// kernel: tpu_custom_call.1
$region0: #{tpu_custom_call.1}
  #allocation0 [shape = 'u32[]', space=smem, size = 0x4, offset = 0x4, fixed_abs, tag = 'smem constant byte address 0x4 - core index']
  #allocation1 [shape = 'u32[144,128]{1,0:T(1,128)}', space=vmem, size = 0x12000, scoped, tag = 'internal scratch']
  %s0 = inlined_call_operand.hbm [shape: f32[2,4,256], index: 0, kind: input, shape index: {}]
  %s1 = inlined_call_operand.vmem [shape: f32[1,4,1], index: 1, kind: input, shape index: {}]
  %s2 = inlined_call_operand.vmem [shape: f32[1,4,1], index: 2, kind: input, shape index: {}]
  %s3 = inlined_call_operand.hbm [shape: f32[2,4,256], index: 3, kind: output, shape index: {}]
  %s4 = sld [smem:[#allocation0]]
  $region26: #{tpu_custom_call.1} parent=0
    _
  %s6 = ssub.s32 1, %s4
  %s7 = scalar_select 0, %s6, %s4
  $region1: #{tpu_custom_call.1} parent=0
    #allocation2 [shape = 'u8[8192]{0}', space=vmem, size = 0x2000, scoped, tag = 'input window, operand 0, single buffered']
    #allocation3 [shape = 's32[1]{0}', space=sflag, size = 0x4, scoped, tag = 'scoped memory for tpu_custom_call.1']
    #allocation4 [shape = 's32[1]{0}', space=sflag, size = 0x4, scoped, tag = 'scoped memory for tpu_custom_call.1']
    #allocation5 [shape = 'u8[8192]{0}', space=vmem, size = 0x2000, scoped, tag = 'output window, operand 0, single buffered']
    %8 = vsyncpa [#allocation3], 0
    %9 = vsyncpa [#allocation4], 0
    // Predicated region
    $region2: #{tpu_custom_call.1} parent=1 // pred_check
      _
    $region3: #{tpu_custom_call.1} parent=1 // pred_check_branch
      %11 = sbr.rel (0) target = $region5
    $region4: #{tpu_custom_call.1} parent=1 // pred_region
      %s13 = ssub.s32 256, 256
      %14 = vsyncadd [#allocation3], %s13
      %s15 = sshll.u32 [#allocation2], 4
      %s16 = int_to_ptr.vmem [resolvable:$true] %s15
      %21 = dma.hbm_to_vmem [thread:$0]  %s0, 256, %s16, [#allocation3], 128, 128, 8
    $region5: #{tpu_custom_call.1} parent=1 // pred_fallthru
      _
    // Predicated region
    $region6: #{tpu_custom_call.1} parent=1 // pred_check
      _
    $region7: #{tpu_custom_call.1} parent=1 // pred_check_branch
      %23 = sbr.rel (0) target = $region9
    $region8: #{tpu_custom_call.1} parent=1 // pred_region
      _
    $region9: #{tpu_custom_call.1} parent=1 // pred_fallthru
      _
    // Predicated region
    $region10: #{tpu_custom_call.1} parent=1 // pred_check
      _
    $region11: #{tpu_custom_call.1} parent=1 // pred_check_branch
      %25 = sbr.rel (0) target = $region13
    $region12: #{tpu_custom_call.1} parent=1 // pred_region
      _
    $region13: #{tpu_custom_call.1} parent=1 // pred_fallthru
      _
    // Predicated region
    $region14: #{tpu_custom_call.1} parent=1 // pred_check
      _
    $region15: #{tpu_custom_call.1} parent=1 // pred_check_branch
      %27 = sbr.rel (0) target = $region17
    $region16: #{tpu_custom_call.1} parent=1 // pred_region
      %28 = dma.done [#allocation3], 256
    $region17: #{tpu_custom_call.1} parent=1 // pred_fallthru
      _
    %v29 = vld [vmem:[#allocation2] sm:$0xff]
    %v30 = vld [vmem:[#allocation2 + $0x8] sm:$0xff]
    %v33 = vcombine.high %v29, %v29
    %v34 = vcombine.high %v30, %v30
    %vm37 = vcmask 1043456
    %v38 = vsel %vm37, %v29, 0.0
    %v39 = vsel %vm37, %v33, 0.0
    %v40 = vadd.f32 %v38, %v39
    %41 = vadd.xlane.f32.xlu0 %v40
    %v42 = vpop.xlane.xlu0 %41
    %v43 = vsel %vm37, %v30, 0.0
    %v44 = vsel %vm37, %v34, 0.0
    %v45 = vadd.f32 %v43, %v44
    %46 = vadd.xlane.f32.xlu0 %v45
    %v47 = vpop.xlane.xlu0 %46
    %v48 = vsel %vm37, %v42, 0.0
    %v49 = vsel %vm37, %v47, 0.0
    %v50 = vadd.f32 %v48, %v49
    %v51 = vmul.f32 %v50, 0.001953125
    %v54 = vunpack.c.l.s4 839922192
    %v55 = vunpack.c.0.s8 %v54
    %v56 = vlaneseq
    %v57 = vshrl.u32 %v56, 7
    %v58 = vsub.s32 %v55, %v57
    %v59 = vrot.slane %v51, %v58
    %v61 = vsub.f32 %v29, %v59
    %v62 = vsub.f32 %v30, %v59
    %v63 = vmul.f32 %v61, %v61
    %v64 = vmul.f32 %v62, %v62
    %v67 = vcombine.high %v63, %v63
    %v68 = vcombine.high %v64, %v64
    %v71 = vsel %vm37, %v63, 0.0
    %v72 = vsel %vm37, %v67, 0.0
    %v73 = vadd.f32 %v71, %v72
    %74 = vadd.xlane.f32.xlu0 %v73
    %v75 = vpop.xlane.xlu0 %74
    %v76 = vsel %vm37, %v64, 0.0
    %v77 = vsel %vm37, %v68, 0.0
    %v78 = vadd.f32 %v76, %v77
    %79 = vadd.xlane.f32.xlu0 %v78
    %v80 = vpop.xlane.xlu0 %79
    %v81 = vsel %vm37, %v75, 0.0
    %v82 = vsel %vm37, %v80, 0.0
    %v83 = vadd.f32 %v81, %v82
    %v84 = vmul.f32 %v83, 0.001953125
    %v85 = vadd.f32 %v84, 1e-05
    %v86 = vrsqrt.pop %v85
    %v87 = vld [vmem:[%s1] sm:$0xf]
    %v88 = vmul.f32 %v86, %v87
    %90 = vset.pattern.permute.xlu0 0
    %91 = vperm.xlu0 %90, %v88
    %v92 = vpop.permute.xlu0 %91
    %v94 = vunpack.c.l.s4 839922192
    %v95 = vunpack.c.0.s8 %v94
    %v96 = vlaneseq
    %v97 = vshrl.u32 %v96, 7
    %v98 = vsub.s32 %v95, %v97
    %v99 = vrot.slane %v92, %v98
    %v101 = vmul.f32 %v61, %v99
    %v102 = vmul.f32 %v62, %v99
    %v103 = vld [vmem:[%s2] sm:$0xf]
    %105 = vset.pattern.permute.xlu0 0
    %106 = vperm.xlu0 %105, %v103
    %v107 = vpop.permute.xlu0 %106
    %v109 = vunpack.c.l.s4 839922192
    %v110 = vunpack.c.0.s8 %v109
    %v111 = vlaneseq
    %v112 = vshrl.u32 %v111, 7
    %v113 = vsub.s32 %v110, %v112
    %v114 = vrot.slane %v107, %v113
    %v116 = vadd.f32 %v101, %v114
    %v117 = vadd.f32 %v102, %v114
    %118 = vst [vmem:[#allocation5] sm:$0xff] %v116
    %119 = vst [vmem:[#allocation5 + $0x8] sm:$0xff] %v117
    // Predicated region
    $region18: #{tpu_custom_call.1} parent=1 // pred_check
      _
    $region19: #{tpu_custom_call.1} parent=1 // pred_check_branch
      %121 = sbr.rel (0) target = $region21
    $region20: #{tpu_custom_call.1} parent=1 // pred_region
      %s123 = ssub.s32 256, 256
      %124 = vsyncadd [#allocation4], %s123
      %s125 = sshll.u32 [#allocation5], 4
      %s126 = int_to_ptr.vmem [resolvable:$true] %s125
      %131 = dma.vmem_to_hbm [thread:$0]  %s126, 256, %s3, [#allocation4], 128, 128, 8
    $region21: #{tpu_custom_call.1} parent=1 // pred_fallthru
      _
    // Predicated region
    $region22: #{tpu_custom_call.1} parent=1 // pred_check
      _
    $region23: #{tpu_custom_call.1} parent=1 // pred_check_branch
      %133 = sbr.rel (0) target = $region25
    $region24: #{tpu_custom_call.1} parent=1 // pred_region
      %134 = dma.done [#allocation4], 256
    $region25: #{tpu_custom_call.1} parent=1 // pred_fallthru
      _
    %135 = vsyncpa [#allocation3], 1
    %136 = vsyncpa [#allocation4], 1

</llo_original>
